<compile_context>
chip_gen: v7x
topology: tpu7x:2x2x1
jax: 0.10.0
libtpu: 0.0.40
codegen_flags: <defaults>
</compile_context>

<pallas_src>
import functools

import jax
import jax.numpy as jnp
from jax.experimental import pallas as pl
from jax.experimental.pallas import tpu as pltpu


def _round_up(x: int, m: int) -> int:
    return ((x + m - 1) // m) * m


def _make_nbv_loss_kernel(lambda_for0: float, lambda_for1: float):
    # Plain Python floats -> folded as literals into the kernel (no captured
    # jax.Array constants, which pallas_call rejects).
    lam0 = float(lambda_for0)
    lam1 = float(lambda_for1)

    def kernel(pred_ref, targ_ref, out_ref, acc_ref):
        i = pl.program_id(0)

        @pl.when(i == 0)
        def _():
            acc_ref[...] = jnp.zeros_like(acc_ref)

        p = pred_ref[...].astype(jnp.float32)
        t = targ_ref[...].astype(jnp.float32)

        # BCE with PyTorch's log clamp at -100. Two-term form kept so soft
        # (non-binary) targets stay exact, matching nn.BCELoss.
        log_p = jnp.maximum(jnp.log(p), -100.0)
        log_1mp = jnp.maximum(jnp.log(1.0 - p), -100.0)
        bce = -(t * log_p + (1.0 - t) * log_1mp)

        # Fused mask + lambda scaling: one weighted sum instead of two sums.
        weight = jnp.where(t == 0.0, lam0, lam1)
        weighted = bce * weight

        # Sublane-preserving partial reduction: (TB, N) -> (8, N) with pure
        # VPU adds; defer the cross-lane (XLU) reduce to the epilogue.
        tb, n = weighted.shape  # static block shape
        partial = weighted.reshape(tb // 8, 8, n).sum(axis=0)
        acc_ref[...] += partial

        @pl.when(i == pl.num_programs(0) - 1)
        def _():
            out_ref[0, 0] = jnp.sum(acc_ref[...])

    return kernel


@functools.partial(jax.jit, static_argnames=("lambda_for0", "lambda_for1",
                                             "block_rows"))
def nbv_loss(predictions: jax.Array, target: jax.Array,
             lambda_for0: float, lambda_for1: float,
             block_rows: int = 256) -> jax.Array:
    """Pallas implementation of NBVLoss.forward. Returns a scalar f32."""
    assert predictions.shape == target.shape
    assert predictions.ndim == 2

    B, N = predictions.shape
    # Lane / sublane alignment: last dim multiple of 128, rows multiple of 8.
    n_pad = max(128, _round_up(N, 128))
    tb = min(_round_up(block_rows, 8), _round_up(B, 8))
    b_pad = _round_up(B, tb)

    if (b_pad != B) or (n_pad != N):
        # pred = 1, targ = 1  ->  bce = -(1*log(1) + 0*(-100)) = 0 exactly,
        # so padding contributes nothing regardless of the lambda weight.
        predictions = jnp.pad(predictions, ((0, b_pad - B), (0, n_pad - N)),
                              constant_values=1)
        target = jnp.pad(target, ((0, b_pad - B), (0, n_pad - N)),
                         constant_values=1)

    kernel = _make_nbv_loss_kernel(lambda_for0, lambda_for1)

    elems = B * N
    cost = pl.CostEstimate(
        flops=8 * elems,
        transcendentals=2 * elems,
        bytes_accessed=elems * (predictions.dtype.itemsize
                                + target.dtype.itemsize) + 4,
    )

    out = pl.pallas_call(
        kernel,
        out_shape=jax.ShapeDtypeStruct((1, 1), jnp.float32),
        grid=(b_pad // tb,),
        in_specs=[
            pl.BlockSpec((tb, n_pad), lambda i: (i, 0)),
            pl.BlockSpec((tb, n_pad), lambda i: (i, 0)),
        ],
        out_specs=pl.BlockSpec((1, 1), lambda i: (0, 0),
                               memory_space=pltpu.MemorySpace.SMEM),
        scratch_shapes=[pltpu.VMEM((8, n_pad), jnp.float32)],
        compiler_params=pltpu.CompilerParams(
            dimension_semantics=("arbitrary",)),
        cost_estimate=cost,
    )(predictions, target)
    return out[0, 0]


def nbv_loss_ref(predictions, target, lambda_for0, lambda_for1):
    """Pure-JAX reference mirroring the PyTorch double loop."""
    p = predictions.astype(jnp.float32)
    t = target.astype(jnp.float32)
    log_p = jnp.maximum(jnp.log(p), -100.0)
    log_1mp = jnp.maximum(jnp.log(1.0 - p), -100.0)
    bce = -(t * log_p + (1.0 - t) * log_1mp)
    is_zero = (t == 0.0)
    loss0 = jnp.sum(jnp.where(is_zero, bce, 0.0))
    loss1 = jnp.sum(jnp.where(is_zero, 0.0, bce))
    return lambda_for1 * loss1 + lambda_for0 * loss0


if __name__ == "__main__":
    # Deterministic "parameters" of the module (its __init__ args).
    lambda_for0 = 0.3
    lambda_for1 = 1.7

    key = jax.random.PRNGKey(0)

    # Case 1: aligned shapes, multiple grid steps (B=32 rows, TB=8 -> grid 4).
    B, N = 32, 256
    kp, kt, key = jax.random.split(key, 3)
    predictions = jax.nn.sigmoid(jax.random.normal(kp, (B, N), dtype=jnp.float32))
    target = (jax.random.uniform(kt, (B, N)) > 0.5).astype(jnp.float32)

    out = nbv_loss(predictions, target, lambda_for0, lambda_for1, block_rows=8)
    out = jax.block_until_ready(out)
    ref = nbv_loss_ref(predictions, target, lambda_for0, lambda_for1)
    assert jnp.allclose(out, ref, rtol=1e-5, atol=1e-4), (out, ref)

    # Case 2: unaligned shapes exercise the zero-contribution padding path.
    B2, N2 = 10, 100
    kp2, kt2, key = jax.random.split(key, 3)
    pred2 = jax.nn.sigmoid(jax.random.normal(kp2, (B2, N2), dtype=jnp.float32))
    targ2 = (jax.random.uniform(kt2, (B2, N2)) > 0.5).astype(jnp.float32)

    out2 = nbv_loss(pred2, targ2, lambda_for0, lambda_for1)
    out2 = jax.block_until_ready(out2)
    ref2 = nbv_loss_ref(pred2, targ2, lambda_for0, lambda_for1)
    assert jnp.allclose(out2, ref2, rtol=1e-5, atol=1e-4), (out2, ref2)

    print("KERNEL_OK")
</pallas_src>

<mosaic_0001>
module attributes {stable_mosaic.version = 11 : i64} {
  func.func @kernel(%arg0: i32, %arg1: memref<8x256xf32, #tpu.memory_space<vmem>>, %arg2: memref<8x256xf32, #tpu.memory_space<vmem>>, %arg3: memref<1x1xf32, #tpu.memory_space<smem>>, %arg4: memref<8x256xf32, #tpu.memory_space<vmem>>) attributes {dimension_semantics = [#tpu.dimension_semantics<arbitrary>], iteration_bounds = array<i64: 4>, scalar_prefetch = 0 : i64, scratch_operands = 1 : i64, tpu.core_type = #tpu.core_type<tc>, window_params = [{transform_indices = @transform_0, window_bounds = array<i64: 8, 256>}, {transform_indices = @transform_1, window_bounds = array<i64: 8, 256>}, {transform_indices = @transform_2, window_bounds = array<i64: 1, 1>}]} {
    %c0_i32 = arith.constant 0 : i32
    %0 = arith.cmpi eq, %arg0, %c0_i32 : i32
    %1 = arith.extui %0 : i1 to i32
    %c0_i32_0 = arith.constant 0 : i32
    %2 = arith.cmpi ne, %1, %c0_i32_0 : i32
    scf.if %2 {
      %cst_17 = arith.constant 0.000000e+00 : f32
      %34 = vector.broadcast %cst_17 : f32 to vector<8x256xf32>
      %c0_18 = arith.constant 0 : index
      %c0_19 = arith.constant 0 : index
      %35 = vector.load %arg4[%c0_18, %c0_19] : memref<8x256xf32, #tpu.memory_space<vmem>>, vector<8x256xf32>
      tpu.vector_store %arg4[%c0_18, %c0_19], %34 {strides = array<i32>} : memref<8x256xf32, #tpu.memory_space<vmem>>, vector<8x256xf32>,
    } else {
    }
    %c0 = arith.constant 0 : index
    %c0_1 = arith.constant 0 : index
    %3 = vector.load %arg1[%c0, %c0_1] : memref<8x256xf32, #tpu.memory_space<vmem>>, vector<8x256xf32>
    %c0_2 = arith.constant 0 : index
    %c0_3 = arith.constant 0 : index
    %4 = vector.load %arg2[%c0_2, %c0_3] : memref<8x256xf32, #tpu.memory_space<vmem>>, vector<8x256xf32>
    %5 = math.log %3 : vector<8x256xf32>
    %cst = arith.constant -1.000000e+02 : f32
    %6 = vector.broadcast %cst : f32 to vector<8x256xf32>
    %7 = arith.maximumf %5, %6 : vector<8x256xf32>
    %cst_4 = arith.constant 1.000000e+00 : f32
    %8 = vector.broadcast %cst_4 : f32 to vector<8x256xf32>
    %9 = arith.subf %8, %3 : vector<8x256xf32>
    %10 = math.log %9 : vector<8x256xf32>
    %cst_5 = arith.constant -1.000000e+02 : f32
    %11 = vector.broadcast %cst_5 : f32 to vector<8x256xf32>
    %12 = arith.maximumf %10, %11 : vector<8x256xf32>
    %13 = arith.mulf %4, %7 : vector<8x256xf32>
    %cst_6 = arith.constant 1.000000e+00 : f32
    %14 = vector.broadcast %cst_6 : f32 to vector<8x256xf32>
    %15 = arith.subf %14, %4 : vector<8x256xf32>
    %16 = arith.mulf %15, %12 : vector<8x256xf32>
    %17 = arith.addf %13, %16 : vector<8x256xf32>
    %cst_7 = arith.constant 0.000000e+00 : f32
    %18 = vector.broadcast %cst_7 : f32 to vector<8x256xf32>
    %19 = arith.subf %18, %17 : vector<8x256xf32>
    %cst_8 = arith.constant 0.000000e+00 : f32
    %20 = vector.broadcast %cst_8 : f32 to vector<8x256xf32>
    %21 = arith.cmpf oeq, %4, %20 : vector<8x256xf32>
    %cst_9 = arith.constant 3.000000e-01 : f32
    %cst_10 = arith.constant 1.700000e+00 : f32
    %22 = vector.broadcast %cst_9 : f32 to vector<8x256xf32>
    %23 = vector.broadcast %cst_10 : f32 to vector<8x256xf32>
    %24 = arith.select %21, %22, %23 : vector<8x256xi1>, vector<8x256xf32>
    %25 = arith.mulf %19, %24 : vector<8x256xf32>
    %26 = vector.shape_cast %25 : vector<8x256xf32> to vector<1x8x256xf32>
    %cst_11 = arith.constant dense<0.000000e+00> : vector<8x256xf32>
    %27 = vector.multi_reduction <add>, %26, %cst_11 [0] : vector<1x8x256xf32> to vector<8x256xf32>
    %c0_12 = arith.constant 0 : index
    %c0_13 = arith.constant 0 : index
    %28 = vector.load %arg4[%c0_12, %c0_13] : memref<8x256xf32, #tpu.memory_space<vmem>>, vector<8x256xf32>
    %29 = arith.addf %28, %27 : vector<8x256xf32>
    %c0_14 = arith.constant 0 : index
    %c0_15 = arith.constant 0 : index
    %30 = vector.load %arg4[%c0_14, %c0_15] : memref<8x256xf32, #tpu.memory_space<vmem>>, vector<8x256xf32>
    tpu.vector_store %arg4[%c0_14, %c0_15], %29 {strides = array<i32>} : memref<8x256xf32, #tpu.memory_space<vmem>>, vector<8x256xf32>,
    %c3_i32 = arith.constant 3 : i32
    %31 = arith.cmpi eq, %arg0, %c3_i32 : i32
    %32 = arith.extui %31 : i1 to i32
    %c0_i32_16 = arith.constant 0 : i32
    %33 = arith.cmpi ne, %32, %c0_i32_16 : i32
    scf.if %33 {
      %c0_17 = arith.constant 0 : index
      %c0_18 = arith.constant 0 : index
      %34 = vector.load %arg4[%c0_17, %c0_18] : memref<8x256xf32, #tpu.memory_space<vmem>>, vector<8x256xf32>
      %35 = vector.shape_cast %34 : vector<8x256xf32> to vector<1x8x256xf32>
      %cst_19 = arith.constant dense<0.000000e+00> : vector<1xf32>
      %36 = vector.multi_reduction <add>, %35, %cst_19 [1, 2] : vector<1x8x256xf32> to vector<1xf32>
      %37 = vector.shape_cast %36 : vector<1xf32> to vector<1x1x1xf32>
      %38 = vector.extract %37[0, 0, 0] : f32 from vector<1x1x1xf32>
      %c0_20 = arith.constant 0 : index
      %c0_21 = arith.constant 0 : index
      %39 = memref.load %arg3[%c0_20, %c0_21] : memref<1x1xf32, #tpu.memory_space<smem>>
      memref.store %38, %arg3[%c0_20, %c0_21] : memref<1x1xf32, #tpu.memory_space<smem>>
    } else {
    }
    return
  }
  func.func @transform_0(%arg0: i32) -> (i32, i32) {
    %c0_i32 = arith.constant 0 : i32
    %c0_i32_0 = arith.constant 0 : i32
    return %arg0, %c0_i32 : i32, i32
  }
  func.func @transform_1(%arg0: i32) -> (i32, i32) {
    %c0_i32 = arith.constant 0 : i32
    %c0_i32_0 = arith.constant 0 : i32
    return %arg0, %c0_i32 : i32, i32
  }
  func.func @transform_2(%arg0: i32) -> (i32, i32) {
    %c0_i32 = arith.constant 0 : i32
    %c0_i32_0 = arith.constant 0 : i32
    %c0_i32_1 = arith.constant 0 : i32
    return %c0_i32, %c0_i32_0 : i32, i32
  }
}

</mosaic_0001>

<llo_original>
// kernel: nbv_loss.1
$region0: #{nbv_loss.1}
  #allocation0 [shape = 'u32[]', space=smem, size = 0x4, offset = 0x4, fixed_abs, tag = 'smem constant byte address 0x4 - core index']
  #allocation1 [shape = 'u32[144,128]{1,0:T(1,128)}', space=vmem, size = 0x12000, scoped, tag = 'internal scratch']
  #allocation2 [shape = 'f32[8,256]{1,0:T(8,128)}', space=vmem, size = 0x2000, scoped, tag = 'scratch operand']
  %s0 = inlined_call_operand.hbm [shape: f32[32,256], index: 0, kind: input, shape index: {}]
  %s1 = inlined_call_operand.hbm [shape: f32[32,256], index: 1, kind: input, shape index: {}]
  %s2 = inlined_call_operand.hbm [shape: f32[1,1], index: 2, kind: output, shape index: {}]
  %s3 = sld [smem:[#allocation0]]
  $region57: #{nbv_loss.1} parent=0
    _
  %s5 = ssub.s32 1, %s3
  %s6 = scalar_select 0, %s5, %s3
  $region1: #{nbv_loss.1} parent=0
    #allocation3 [shape = 'u8[16384]{0}', space=vmem, size = 0x4000, scoped, tag = 'input window, operand 0']
    #allocation4 [shape = 's32[2]{0}', space=sflag, size = 0x8, scoped, tag = 'scoped memory for nbv_loss.1']
    #allocation5 [shape = 's32[2]{0}', space=sflag, size = 0x8, scoped, tag = 'scoped memory for nbv_loss.1']
    #allocation6 [shape = 'u8[16384]{0}', space=vmem, size = 0x4000, scoped, tag = 'input window, operand 1']
    #allocation7 [shape = 's32[2]{0}', space=sflag, size = 0x8, scoped, tag = 'scoped memory for nbv_loss.1']
    #allocation8 [shape = 'u8[512]{0}', space=smem, size = 0x200, scoped, tag = 'output window, operand 0, single buffered']
    %7 = vsyncpa [#allocation4], 0
    %s8 = scalar_lea.sflag [#allocation4], 1
    %9 = vsyncpa %s8, 0
    %10 = vsyncpa [#allocation7], 0
    %s11 = scalar_lea.sflag [#allocation7], 1
    %12 = vsyncpa %s11, 0
    %13 = vsyncpa [#allocation5], 0
    loop: start=0, step=1, limit=6
    $region2: #{nbv_loss.1} parent=1 // loop_pre_header
      _
    $region3: #{nbv_loss.1} parent=1 // loop_header
      %s15 = sphi 0, %s19
      %p16 = scmp.ge.s32.totalorder %s15, 6
      %s25 = sphi 0, %s27
      %s28 = sphi 0, %s25
      %s29 = sphi 0, %s28
      %s45 = sphi 0, %s29
      %s51 = sphi 0, %s53
      %s54 = sphi 0, %s51
      %s55 = sphi 0, %s54
      %s71 = sphi 0, %s55
      %s75 = sphi 0, %s75
      %s77 = sphi 0, %s75
      %s78 = sphi 0, %s77
      %s92 = sphi 0, %s78
    $region4: #{nbv_loss.1} parent=1 // loop_header_branch
      %18 = sbr.rel (%p16) target = $region8
    $region5: #{nbv_loss.1} parent=1 // loop_body
      %s20 = ssub.s32 %s15, 1
      %s21 = ssub.s32 %s15, 2
      %s22 = sadd.s32 %s15, 1
      %s23 = ssub.s32 %s15, %s22
      %p24 = scmp.eq.s32.totalorder %s23, 0
      %s26 = sadd.s32 %s25, 1
      %s27 = scalar_select %p24, %s25, %s26
      %p30 = pneg %p24
      %p31 = scmp.eq.s32.totalorder %s15, 3
      %p32 = por %p30, %p31
      %p33 = scmp.ne.s32.totalorder %s25, %s28
      %p34 = scmp.eq.s32.totalorder %s15, 0
      %p35 = por %p33, %p34
      %p36 = scmp.ne.s32.totalorder %s25, %s28
      %p37 = scmp.eq.s32.totalorder %s20, 3
      %p38 = por %p36, %p37
      %p39 = scmp.ne.s32.totalorder %s28, %s29
      %p40 = scmp.eq.s32.totalorder %s20, 0
      %p41 = por %p39, %p40
      %p42 = scmp.ne.s32.totalorder %s28, %s29
      %p43 = scmp.eq.s32.totalorder %s21, 3
      %p44 = por %p42, %p43
      %p46 = scmp.ne.s32.totalorder %s29, %s45
      %p47 = scmp.eq.s32.totalorder %s21, 0
      %p48 = por %p46, %p47
      %s49 = ssub.s32 %s15, %s22
      %p50 = scmp.eq.s32.totalorder %s49, 0
      %s52 = sadd.s32 %s51, 1
      %s53 = scalar_select %p50, %s51, %s52
      %p56 = pneg %p50
      %p57 = scmp.eq.s32.totalorder %s15, 3
      %p58 = por %p56, %p57
      %p59 = scmp.ne.s32.totalorder %s51, %s54
      %p60 = scmp.eq.s32.totalorder %s15, 0
      %p61 = por %p59, %p60
      %p62 = scmp.ne.s32.totalorder %s51, %s54
      %p63 = scmp.eq.s32.totalorder %s20, 3
      %p64 = por %p62, %p63
      %p65 = scmp.ne.s32.totalorder %s54, %s55
      %p66 = scmp.eq.s32.totalorder %s20, 0
      %p67 = por %p65, %p66
      %p68 = scmp.ne.s32.totalorder %s54, %s55
      %p69 = scmp.eq.s32.totalorder %s21, 3
      %p70 = por %p68, %p69
      %p72 = scmp.ne.s32.totalorder %s55, %s71
      %p73 = scmp.eq.s32.totalorder %s21, 0
      %p74 = por %p72, %p73
      %s76 = sadd.s32 %s75, 1
      %p79 = scmp.eq.s32.totalorder %s15, 3
      %p80 = scmp.ne.s32.totalorder %s75, %s77
      %p81 = scmp.eq.s32.totalorder %s15, 0
      %p82 = por %p80, %p81
      %p83 = scmp.ne.s32.totalorder %s75, %s77
      %p84 = scmp.eq.s32.totalorder %s20, 3
      %p85 = por %p83, %p84
      %p86 = scmp.ne.s32.totalorder %s77, %s78
      %p87 = scmp.eq.s32.totalorder %s20, 0
      %p88 = por %p86, %p87
      %p89 = scmp.ne.s32.totalorder %s77, %s78
      %p90 = scmp.eq.s32.totalorder %s21, 3
      %p91 = por %p89, %p90
      %p93 = scmp.ne.s32.totalorder %s78, %s92
      %p94 = scmp.eq.s32.totalorder %s21, 0
      %p95 = por %p93, %p94
      %p96 = scmp.le.s32.totalorder 1, %s15
      %p97 = scmp.lt.s32.totalorder %s15, 5
      %p98 = pnand %p96, %p97
      %p99 = pneg %p98
      // Predicated region
      $region9: #{nbv_loss.1} parent=5 // pred_check
        _
      $region10: #{nbv_loss.1} parent=5 // pred_check_branch
        %101 = sbr.rel (%p98) target = $region12
      $region11: #{nbv_loss.1} parent=5 // pred_region
        %s102 = ssub.s32 %s15, 1
      $region12: #{nbv_loss.1} parent=5 // pred_fallthru
        _
      %p103 = scmp.lt.s32.totalorder %s15, 4
      // Predicated region
      $region13: #{nbv_loss.1} parent=5 // pred_check
        %p104 = pneg %p103
      $region14: #{nbv_loss.1} parent=5 // pred_check_branch
        %106 = sbr.rel (%p104) target = $region16
      $region15: #{nbv_loss.1} parent=5 // pred_region
        // Predicated region
        $region17: #{nbv_loss.1} parent=15 // pred_check
          %p107 = pneg %p35
        $region18: #{nbv_loss.1} parent=15 // pred_check_branch
          %109 = sbr.rel (%p107) target = $region20
        $region19: #{nbv_loss.1} parent=15 // pred_region
          %s110 = sand.u32 %s25, 1
          %s111 = scalar_lea.sflag [#allocation4], %s110
          %s112 = sand.u32 %s25, 1
          %s113 = smul.addr %s112, 16
          %s114 = scalar_lea.vmem [#allocation3], %s113
          %s116 = ssub.s32 256, 256
          %117 = vsyncadd %s111, %s116
          %s118 = smul.addr %s15, 2
          %s119 = smul.addr %s118, 128
          %s120 = scalar_lea.hbm %s0, %s119
          %s122 = sshll.u32 %s114, 4
          %s123 = int_to_ptr.vmem [resolvable:$true] %s122
          %125 = dma.hbm_to_vmem [thread:$0]  %s120, 256, %s123, %s111
        $region20: #{nbv_loss.1} parent=15 // pred_fallthru
          _
        // Predicated region
        $region21: #{nbv_loss.1} parent=15 // pred_check
          %p126 = pneg %p61
        $region22: #{nbv_loss.1} parent=15 // pred_check_branch
          %128 = sbr.rel (%p126) target = $region24
        $region23: #{nbv_loss.1} parent=15 // pred_region
          %s129 = sand.u32 %s51, 1
          %s130 = scalar_lea.sflag [#allocation7], %s129
          %s131 = sand.u32 %s51, 1
          %s132 = smul.addr %s131, 16
          %s133 = scalar_lea.vmem [#allocation6], %s132
          %s135 = ssub.s32 256, 256
          %136 = vsyncadd %s130, %s135
          %s137 = smul.addr %s15, 2
          %s138 = smul.addr %s137, 128
          %s139 = scalar_lea.hbm %s1, %s138
          %s141 = sshll.u32 %s133, 4
          %s142 = int_to_ptr.vmem [resolvable:$true] %s141
          %144 = dma.hbm_to_vmem [thread:$0]  %s139, 256, %s142, %s130
        $region24: #{nbv_loss.1} parent=15 // pred_fallthru
          _
      $region16: #{nbv_loss.1} parent=5 // pred_fallthru
        _
      %p145 = scmp.le.s32.totalorder 1, %s15
      %p146 = scmp.lt.s32.totalorder %s15, 5
      %p147 = pnand %p145, %p146
      %p148 = pneg %p147
      // Predicated region
      $region25: #{nbv_loss.1} parent=5 // pred_check
        _
      $region26: #{nbv_loss.1} parent=5 // pred_check_branch
        %150 = sbr.rel (%p147) target = $region28
      $region27: #{nbv_loss.1} parent=5 // pred_region
        %s151 = ssub.s32 %s15, 1
        %s152 = sand.u32 %s28, 1
        %s153 = scalar_lea.sflag [#allocation4], %s152
        %s154 = sand.u32 %s28, 1
        %s155 = smul.addr %s154, 16
        %s156 = scalar_lea.vmem [#allocation3], %s155
        // Predicated region
        $region29: #{nbv_loss.1} parent=27 // pred_check
          %p157 = pneg %p41
        $region30: #{nbv_loss.1} parent=27 // pred_check_branch
          %159 = sbr.rel (%p157) target = $region32
        $region31: #{nbv_loss.1} parent=27 // pred_region
          %160 = dma.done %s153, 256
        $region32: #{nbv_loss.1} parent=27 // pred_fallthru
          _
        %s161 = sand.u32 %s54, 1
        %s162 = scalar_lea.sflag [#allocation7], %s161
        %s163 = sand.u32 %s54, 1
        %s164 = smul.addr %s163, 16
        %s165 = scalar_lea.vmem [#allocation6], %s164
        // Predicated region
        $region33: #{nbv_loss.1} parent=27 // pred_check
          %p166 = pneg %p67
        $region34: #{nbv_loss.1} parent=27 // pred_check_branch
          %168 = sbr.rel (%p166) target = $region36
        $region35: #{nbv_loss.1} parent=27 // pred_region
          %169 = dma.done %s162, 256
        $region36: #{nbv_loss.1} parent=27 // pred_fallthru
          _
        %s170 = sand.u32 %s28, 1
        %s171 = scalar_lea.sflag [#allocation4], %s170
        %s172 = sand.u32 %s28, 1
        %s173 = smul.addr %s172, 16
        %s174 = scalar_lea.vmem [#allocation3], %s173
        %p175 = pneg %p41
        %p176 = pneg %p38
        %s177 = sand.u32 %s54, 1
        %s178 = scalar_lea.sflag [#allocation7], %s177
        %s179 = sand.u32 %s54, 1
        %s180 = smul.addr %s179, 16
        %s181 = scalar_lea.vmem [#allocation6], %s180
        %p182 = pneg %p67
        %p183 = pneg %p64
        %p184 = pneg %p88
        %p185 = pneg %p85
        %p186 = scmp.eq.s32.totalorder %s20, 0
        // Predicated region
        $region37: #{nbv_loss.1} parent=27 // pred_check
          %p187 = pneg %p186
        $region38: #{nbv_loss.1} parent=27 // pred_check_branch
          %189 = sbr.rel (%p187) target = $region40
        $region39: #{nbv_loss.1} parent=27 // pred_region
          %190 = vst [vmem:[#allocation2] sm:$0xff] 0.0
          %191 = vst [vmem:[#allocation2 + $0x8] sm:$0xff] 0.0
        $region40: #{nbv_loss.1} parent=27 // pred_fallthru
          _
        %v192 = vld [vmem:[%s156] sm:$0xff]
        %v193 = vld [vmem:[%s156 + $0x8] sm:$0xff]
        %v194 = vld [vmem:[%s165] sm:$0xff]
        %v195 = vld [vmem:[%s165 + $0x8] sm:$0xff]
        %v196 = vlog2.pop %v192
        %v197 = vmul.f32 %v196, 0.6931472
        %v198 = vlog2.pop %v193
        %v199 = vmul.f32 %v198, 0.6931472
        %v200 = vmax.f32 %v197, -100.0
        %v201 = vmax.f32 %v199, -100.0
        %v202 = vsub.f32 1.0, %v192
        %v203 = vsub.f32 1.0, %v193
        %v204 = vlog2.pop %v202
        %v205 = vmul.f32 %v204, 0.6931472
        %v206 = vlog2.pop %v203
        %v207 = vmul.f32 %v206, 0.6931472
        %v208 = vmax.f32 %v205, -100.0
        %v209 = vmax.f32 %v207, -100.0
        %v210 = vmul.f32 %v194, %v200
        %v211 = vmul.f32 %v195, %v201
        %v212 = vsub.f32 1.0, %v194
        %v213 = vsub.f32 1.0, %v195
        %v214 = vmul.f32 %v212, %v208
        %v215 = vmul.f32 %v213, %v209
        %v216 = vadd.f32 %v210, %v214
        %v217 = vadd.f32 %v211, %v215
        %v218 = vsub.f32 0.0, %v216
        %v219 = vsub.f32 0.0, %v217
        %vm220 = vcmp.eq.f32.partialorder %v194, 0.0
        %vm221 = vcmp.eq.f32.partialorder %v195, 0.0
        %v222 = vsel %vm220, 0.3, 1.7
        %v223 = vsel %vm221, 0.3, 1.7
        %v224 = vmul.f32 %v218, %v222
        %v225 = vmul.f32 %v219, %v223
        %v226 = vadd.f32 %v224, 0.0
        %v227 = vadd.f32 %v225, 0.0
        %v228 = vld [vmem:[#allocation2] sm:$0xff]
        %v229 = vld [vmem:[#allocation2 + $0x8] sm:$0xff]
        %v230 = vadd.f32 %v228, %v226
        %v231 = vadd.f32 %v229, %v227
        %232 = vst [vmem:[#allocation2] sm:$0xff] %v230
        %233 = vst [vmem:[#allocation2 + $0x8] sm:$0xff] %v231
        %p234 = scmp.eq.s32.totalorder %s20, 3
        // Predicated region
        $region41: #{nbv_loss.1} parent=27 // pred_check
          %p235 = pneg %p234
        $region42: #{nbv_loss.1} parent=27 // pred_check_branch
          %237 = sbr.rel (%p235) target = $region44
        $region43: #{nbv_loss.1} parent=27 // pred_region
          %v238 = vld [vmem:[#allocation2] sm:$0xff]
          %v239 = vld [vmem:[#allocation2 + $0x8] sm:$0xff]
          %v240 = vadd.f32 %v238, %v239
          %241 = vadd.xlane.f32.xlu0 %v240
          %v242 = vpop.xlane.xlu0 %241
          %v243 = vrot.slane %v242, 4
          %v244 = vadd.f32 %v242, %v243
          %v245 = vrot.slane %v244, 2
          %v246 = vadd.f32 %v244, %v245
          %v247 = vrot.slane %v246, 1
          %v248 = vadd.f32 %v246, %v247
          %s249 = vtos %v248
          %s250 = scalar_lea.smem [#allocation8], 0
          %251 = sst [smem:[%s250]] %s249
        $region44: #{nbv_loss.1} parent=27 // pred_fallthru
          _
        // Predicated region
        $region45: #{nbv_loss.1} parent=27 // pred_check
          %p252 = pneg %p85
        $region46: #{nbv_loss.1} parent=27 // pred_check_branch
          %254 = sbr.rel (%p252) target = $region48
        $region47: #{nbv_loss.1} parent=27 // pred_region
          %s256 = ssub.s32 16, 16
          %257 = vsyncadd [#allocation5], %s256
          %260 = dma.smem_to_hbm [#allocation8], 16, %s2, [#allocation5]
        $region48: #{nbv_loss.1} parent=27 // pred_fallthru
          _
        // Predicated region
        $region49: #{nbv_loss.1} parent=27 // pred_check
          %p261 = pneg %p85
        $region50: #{nbv_loss.1} parent=27 // pred_check_branch
          %263 = sbr.rel (%p261) target = $region52
        $region51: #{nbv_loss.1} parent=27 // pred_region
          %264 = dma.done [#allocation5], 16
        $region52: #{nbv_loss.1} parent=27 // pred_fallthru
          _
        %265 = sfence
      $region28: #{nbv_loss.1} parent=5 // pred_fallthru
        _
      %p266 = scmp.le.s32.totalorder 2, %s15
      // Predicated region
      $region53: #{nbv_loss.1} parent=5 // pred_check
        %p267 = pneg %p266
      $region54: #{nbv_loss.1} parent=5 // pred_check_branch
        %269 = sbr.rel (%p267) target = $region56
      $region55: #{nbv_loss.1} parent=5 // pred_region
        %s270 = ssub.s32 %s15, 2
      $region56: #{nbv_loss.1} parent=5 // pred_fallthru
        _
    $region6: #{nbv_loss.1} parent=1 // loop_footer
      %s19 = sadd.s32 1, %s15
    $region7: #{nbv_loss.1} parent=1 // loop_footer_branch
      %14 = sbr.rel target = $region3
    $region8: #{nbv_loss.1} parent=1 // loop_exit
      _
    %271 = vsyncpa [#allocation4], 1
    %s272 = scalar_lea.sflag [#allocation4], 1
    %273 = vsyncpa %s272, 1
    %274 = vsyncpa [#allocation7], 1
    %s275 = scalar_lea.sflag [#allocation7], 1
    %276 = vsyncpa %s275, 1
    %277 = vsyncpa [#allocation5], 1
    %s278 = scalar_lea.sflag [#allocation5], 1
    %279 = vsyncpa %s278, 1

</llo_original>
